<compile_context>
chip_gen: v6e
topology: v6e:2x2x1
jax: 0.10.0
libtpu: 0.0.40
codegen_flags: <defaults>
</compile_context>

<pallas_src>
import functools

import jax
import jax.numpy as jnp
from jax.experimental import pallas as pl
from jax.experimental.pallas import tpu as pltpu


def _round_up(x, m):
    return ((x + m - 1) // m) * m


def _vmem_capacity_bytes():
    # Generation-aware VMEM query; conservative (v7x-sized) fallback.
    try:
        return int(pltpu.get_tpu_info().vmem_capacity_bytes)
    except Exception:  # noqa: BLE001
        return 64 * 1024 * 1024


def _feat_stats_kernel(x_ref, y_ref, o_ref, *, nc, hw):
    """One grid step: statistics for TM rows (= TM (n, c) pairs).

    x_ref, y_ref : (TM, HW) input tiles (original dtype; cast to f32 here).
    o_ref        : (1, 8, 128) per-tile partial-sum slab; sublane 0 / lane 0
                   carries sum((mean_x - mean_y)^2), lane 1 carries
                   sum((std_x - std_y)^2) over the valid rows of this tile.
    """
    tm = x_ref.shape[0]
    x = x_ref[...].astype(jnp.float32)
    y = y_ref[...].astype(jnp.float32)

    eps = jnp.float32(1e-5)
    inv_hw = jnp.float32(1.0 / hw)
    # torch.var default is unbiased (/(HW-1)); HW == 1 gives NaN like torch.
    inv_den = jnp.float32(1.0 / (hw - 1)) if hw > 1 else jnp.float32(jnp.nan)

    x_mean = jnp.sum(x, axis=1, keepdims=True) * inv_hw      # (TM, 1)
    y_mean = jnp.sum(y, axis=1, keepdims=True) * inv_hw
    # Two-pass variance on the resident VMEM tile: centered like torch,
    # immune to the one-pass sum/sumsq cancellation.
    dx = x - x_mean
    dy = y - y_mean
    x_var = jnp.sum(dx * dx, axis=1, keepdims=True) * inv_den
    y_var = jnp.sum(dy * dy, axis=1, keepdims=True) * inv_den
    x_std = jnp.sqrt(x_var + eps)
    y_std = jnp.sqrt(y_var + eps)

    # Mask rows of a (possibly partial) last tile that fall past N*C; this
    # also blocks NaN/Inf from out-of-bounds garbage rows.
    row = pl.program_id(0) * tm + jax.lax.broadcasted_iota(jnp.int32, (tm, 1), 0)
    valid = row < nc
    d_mean = jnp.where(valid, x_mean - y_mean, 0.0)
    d_std = jnp.where(valid, x_std - y_std, 0.0)

    s_mean = jnp.sum(d_mean * d_mean)
    s_std = jnp.sum(d_std * d_std)

    # Full (8, 128) unmasked store per tile: s_mean in lane 0, s_std in lane 1
    # of sublane 0, zeros elsewhere.
    lane = jax.lax.broadcasted_iota(jnp.int32, (8, 128), 1)
    sub = jax.lax.broadcasted_iota(jnp.int32, (8, 128), 0)
    row0 = jnp.where(lane == 0, s_mean, jnp.where(lane == 1, s_std, 0.0))
    slab = jnp.where(sub == 0, row0, 0.0)
    o_ref[...] = slab[None].astype(jnp.float32)


def _choose_tile_rows(nc, hw, itemsize, vmem_cap):
    """Pick TM (rows per tile) with lane padding + f32 temporaries accounted."""
    hw_pad = _round_up(max(hw, 1), 128)   # physical lane padding of a VMEM tile
    # Per-row VMEM bytes:
    #   DMA double-buffers: 2 inputs x 2 pipeline buffers x hw_pad x itemsize
    #   f32 compute temporaries (cast, centered, squared): ~6 x hw_pad x 4
    per_row = 4 * hw_pad * itemsize + 6 * hw_pad * 4

    if vmem_cap >= 96 * 1024 * 1024:      # v5e / v6e class (128 MiB physical)
        budget = 56 * 1024 * 1024
        tm_cap = 16384
    else:                                 # v7x class (64 MiB physical)
        budget = 24 * 1024 * 1024
        tm_cap = 8192

    tm = budget // per_row
    tm = max(8, min(tm, tm_cap))

    nc_pad = _round_up(nc, 8)

    def rows_for(ntiles):
        return max(8, _round_up(pl.cdiv(nc_pad, ntiles), 8))

    # Megacore: guarantee >=2 grid steps when there is enough work; prefer
    # >=8 steps as long as each tile still moves >= ~1 MiB of input data.
    if nc_pad >= 16:
        tm = min(tm, rows_for(2))
        tile_row_bytes = 2 * hw_pad * itemsize
        if rows_for(8) * tile_row_bytes >= (1 << 20):
            tm = min(tm, rows_for(8))

    tm = (tm // 8) * 8
    tm = min(tm, nc_pad)
    return max(tm, 8)


def feat_stats_loss(feat_x, feat_y):
    """Pallas implementation of FeatStatsLoss.forward for NCHW inputs."""
    assert feat_x.shape == feat_y.shape and feat_x.ndim == 4
    N, C, H, W = feat_x.shape
    nc, hw = N * C, H * W

    # Keep the narrow dtype over the wire; cast to f32 inside the kernel.
    x2d = feat_x.reshape(nc, hw)
    y2d = feat_y.reshape(nc, hw)

    # TODO(synk): for very large HW (multi-MiB rows) add a second, last,
    # "arbitrary" grid axis over HW tiles with per-row sum/sumsq scratch and
    # pl.when init/finalize; current design keeps one full row per VMEM tile.
    # TODO(synk): for HW far from a multiple of 128 (e.g. 49/196), repack rows
    # lane-dense and do a block-segmented MXU reduction to recover lane/DMA
    # utilization.
    vmem_cap = _vmem_capacity_bytes()
    itemsize = x2d.dtype.itemsize
    hw_pad = _round_up(hw, 128)
    tm = _choose_tile_rows(nc, hw, itemsize, vmem_cap)
    num_tiles = pl.cdiv(nc, tm)

    # vmem limit: DMA double-buffers + f32 intermediates + out slabs/headroom,
    # clamped per generation (stay well inside v7x's 64 MiB physical VMEM).
    working_set = 4 * tm * hw_pad * itemsize + 6 * tm * hw_pad * 4 + (2 << 20)
    if vmem_cap >= 96 * 1024 * 1024:
        vmem_limit = int(min(96 * 1024 * 1024, max(48 * 1024 * 1024, working_set)))
    else:
        vmem_limit = int(min(28 * 1024 * 1024, max(20 * 1024 * 1024, working_set)))

    kernel = functools.partial(_feat_stats_kernel, nc=nc, hw=hw)
    partials = pl.pallas_call(
        kernel,
        out_shape=jax.ShapeDtypeStruct((num_tiles, 8, 128), jnp.float32),
        grid=(num_tiles,),
        in_specs=[
            pl.BlockSpec((tm, hw), lambda i: (i, 0)),
            pl.BlockSpec((tm, hw), lambda i: (i, 0)),
        ],
        out_specs=pl.BlockSpec((1, 8, 128), lambda i: (i, 0, 0)),
        compiler_params=pltpu.CompilerParams(
            dimension_semantics=("parallel",),
            vmem_limit_bytes=vmem_limit,
        ),
    )(x2d, y2d)

    # Tiny epilogue: mean over the N*C (n, c) statistics.
    sums = jnp.sum(partials[:, 0, :2], axis=0)   # (2,) = [sum_mean, sum_std]
    return (sums[0] + sums[1]) / jnp.float32(nc)


def _reference(feat_x, feat_y, eps=1e-5):
    # Pure-JAX reference mirroring the PyTorch code.
    N, C, H, W = feat_x.shape

    def stats(f):
        f = f.reshape(N, C, -1).astype(jnp.float32)
        mean = f.mean(axis=2)
        var = f.var(axis=2, ddof=1)  # unbiased, like torch.var default
        std = jnp.sqrt(var + eps)
        return mean, std

    xm, xs = stats(feat_x)
    ym, ys = stats(feat_y)
    return jnp.mean((xm - ym) ** 2) + jnp.mean((xs - ys) ** 2)


if __name__ == "__main__":
    key = jax.random.PRNGKey(0)
    kx, ky = jax.random.split(key)
    N, C, H, W = 2, 4, 16, 16
    feat_x = jax.random.normal(kx, (N, C, H, W), dtype=jnp.float32)
    feat_y = jax.random.normal(ky, (N, C, H, W), dtype=jnp.float32) * 1.5 + 0.3

    loss = feat_stats_loss(feat_x, feat_y)
    loss = jax.block_until_ready(loss)

    ref = _reference(feat_x, feat_y)
    assert jnp.allclose(loss, ref, rtol=1e-4, atol=1e-6), (loss, ref)
    print("KERNEL_OK")
</pallas_src>

<mosaic_0001>
module attributes {stable_mosaic.version = 11 : i64} {
  func.func @_feat_stats_kernel(%arg0: i32, %arg1: memref<8x256xf32, #tpu.memory_space<vmem>>, %arg2: memref<8x256xf32, #tpu.memory_space<vmem>>, %arg3: memref<1x8x128xf32, #tpu.memory_space<vmem>>) attributes {dimension_semantics = [#tpu.dimension_semantics<parallel>], iteration_bounds = array<i64: 1>, scalar_prefetch = 0 : i64, scratch_operands = 0 : i64, tpu.core_type = #tpu.core_type<tc>, window_params = [{transform_indices = @transform_0, window_bounds = array<i64: 8, 256>}, {transform_indices = @transform_1, window_bounds = array<i64: 8, 256>}, {transform_indices = @transform_2, window_bounds = array<i64: 1, 8, 128>}]} {
    %c0 = arith.constant 0 : index
    %c0_0 = arith.constant 0 : index
    %0 = vector.load %arg1[%c0, %c0_0] : memref<8x256xf32, #tpu.memory_space<vmem>>, vector<8x256xf32>
    %c0_1 = arith.constant 0 : index
    %c0_2 = arith.constant 0 : index
    %1 = vector.load %arg2[%c0_1, %c0_2] : memref<8x256xf32, #tpu.memory_space<vmem>>, vector<8x256xf32>
    %cst = arith.constant dense<0.000000e+00> : vector<8xf32>
    %2 = vector.multi_reduction <add>, %0, %cst [1] : vector<8x256xf32> to vector<8xf32>
    %3 = vector.shape_cast %2 : vector<8xf32> to vector<8x1xf32>
    %cst_3 = arith.constant 3.906250e-03 : f32
    %4 = vector.broadcast %cst_3 : f32 to vector<8x1xf32>
    %5 = arith.mulf %3, %4 : vector<8x1xf32>
    %cst_4 = arith.constant dense<0.000000e+00> : vector<8xf32>
    %6 = vector.multi_reduction <add>, %1, %cst_4 [1] : vector<8x256xf32> to vector<8xf32>
    %7 = vector.shape_cast %6 : vector<8xf32> to vector<8x1xf32>
    %cst_5 = arith.constant 3.906250e-03 : f32
    %8 = vector.broadcast %cst_5 : f32 to vector<8x1xf32>
    %9 = arith.mulf %7, %8 : vector<8x1xf32>
    %10 = vector.broadcast %5 : vector<8x1xf32> to vector<8x256xf32>
    %11 = arith.subf %0, %10 : vector<8x256xf32>
    %12 = vector.broadcast %9 : vector<8x1xf32> to vector<8x256xf32>
    %13 = arith.subf %1, %12 : vector<8x256xf32>
    %14 = arith.mulf %11, %11 : vector<8x256xf32>
    %cst_6 = arith.constant dense<0.000000e+00> : vector<8xf32>
    %15 = vector.multi_reduction <add>, %14, %cst_6 [1] : vector<8x256xf32> to vector<8xf32>
    %16 = vector.shape_cast %15 : vector<8xf32> to vector<8x1xf32>
    %cst_7 = arith.constant 0.00392156886 : f32
    %17 = vector.broadcast %cst_7 : f32 to vector<8x1xf32>
    %18 = arith.mulf %16, %17 : vector<8x1xf32>
    %19 = arith.mulf %13, %13 : vector<8x256xf32>
    %cst_8 = arith.constant dense<0.000000e+00> : vector<8xf32>
    %20 = vector.multi_reduction <add>, %19, %cst_8 [1] : vector<8x256xf32> to vector<8xf32>
    %21 = vector.shape_cast %20 : vector<8xf32> to vector<8x1xf32>
    %cst_9 = arith.constant 0.00392156886 : f32
    %22 = vector.broadcast %cst_9 : f32 to vector<8x1xf32>
    %23 = arith.mulf %21, %22 : vector<8x1xf32>
    %cst_10 = arith.constant 9.99999974E-6 : f32
    %24 = vector.broadcast %cst_10 : f32 to vector<8x1xf32>
    %25 = arith.addf %18, %24 : vector<8x1xf32>
    %26 = math.sqrt %25 : vector<8x1xf32>
    %cst_11 = arith.constant 9.99999974E-6 : f32
    %27 = vector.broadcast %cst_11 : f32 to vector<8x1xf32>
    %28 = arith.addf %23, %27 : vector<8x1xf32>
    %29 = math.sqrt %28 : vector<8x1xf32>
    %c8_i32 = arith.constant 8 : i32
    %30 = arith.muli %arg0, %c8_i32 : i32
    %31 = tpu.iota {dimensions = array<i32: 0>} : vector<8x1xi32>
    %32 = vector.broadcast %30 : i32 to vector<8x1xi32>
    %33 = arith.addi %32, %31 : vector<8x1xi32>
    %c8_i32_12 = arith.constant 8 : i32
    %34 = vector.broadcast %c8_i32_12 : i32 to vector<8x1xi32>
    %35 = arith.cmpi slt, %33, %34 : vector<8x1xi32>
    %36 = arith.subf %5, %9 : vector<8x1xf32>
    %cst_13 = arith.constant 0.000000e+00 : f32
    %37 = vector.broadcast %cst_13 : f32 to vector<8x1xf32>
    %38 = arith.select %35, %36, %37 : vector<8x1xi1>, vector<8x1xf32>
    %39 = arith.subf %26, %29 : vector<8x1xf32>
    %cst_14 = arith.constant 0.000000e+00 : f32
    %40 = vector.broadcast %cst_14 : f32 to vector<8x1xf32>
    %41 = arith.select %35, %39, %40 : vector<8x1xi1>, vector<8x1xf32>
    %42 = arith.mulf %38, %38 : vector<8x1xf32>
    %43 = vector.shape_cast %42 : vector<8x1xf32> to vector<1x8x1xf32>
    %cst_15 = arith.constant dense<0.000000e+00> : vector<1xf32>
    %44 = vector.multi_reduction <add>, %43, %cst_15 [1, 2] : vector<1x8x1xf32> to vector<1xf32>
    %45 = vector.shape_cast %44 : vector<1xf32> to vector<1x1x1xf32>
    %46 = vector.extract %45[0, 0, 0] : f32 from vector<1x1x1xf32>
    %47 = arith.mulf %41, %41 : vector<8x1xf32>
    %48 = vector.shape_cast %47 : vector<8x1xf32> to vector<1x8x1xf32>
    %cst_16 = arith.constant dense<0.000000e+00> : vector<1xf32>
    %49 = vector.multi_reduction <add>, %48, %cst_16 [1, 2] : vector<1x8x1xf32> to vector<1xf32>
    %50 = vector.shape_cast %49 : vector<1xf32> to vector<1x1x1xf32>
    %51 = vector.extract %50[0, 0, 0] : f32 from vector<1x1x1xf32>
    %52 = tpu.iota {dimensions = array<i32: 1>} : vector<8x128xi32>
    %53 = tpu.iota {dimensions = array<i32: 0>} : vector<8x128xi32>
    %c0_i32 = arith.constant 0 : i32
    %54 = vector.broadcast %c0_i32 : i32 to vector<8x128xi32>
    %55 = arith.cmpi eq, %52, %54 : vector<8x128xi32>
    %c1_i32 = arith.constant 1 : i32
    %56 = vector.broadcast %c1_i32 : i32 to vector<8x128xi32>
    %57 = arith.cmpi eq, %52, %56 : vector<8x128xi32>
    %cst_17 = arith.constant 0.000000e+00 : f32
    %58 = vector.broadcast %51 : f32 to vector<8x128xf32>
    %59 = vector.broadcast %cst_17 : f32 to vector<8x128xf32>
    %60 = arith.select %57, %58, %59 : vector<8x128xi1>, vector<8x128xf32>
    %61 = vector.broadcast %46 : f32 to vector<8x128xf32>
    %62 = arith.select %55, %61, %60 : vector<8x128xi1>, vector<8x128xf32>
    %c0_i32_18 = arith.constant 0 : i32
    %63 = vector.broadcast %c0_i32_18 : i32 to vector<8x128xi32>
    %64 = arith.cmpi eq, %53, %63 : vector<8x128xi32>
    %cst_19 = arith.constant 0.000000e+00 : f32
    %65 = vector.broadcast %cst_19 : f32 to vector<8x128xf32>
    %66 = arith.select %64, %62, %65 : vector<8x128xi1>, vector<8x128xf32>
    %67 = vector.shape_cast %66 : vector<8x128xf32> to vector<1x8x128xf32>
    %c0_20 = arith.constant 0 : index
    %c0_21 = arith.constant 0 : index
    %c0_22 = arith.constant 0 : index
    %68 = vector.load %arg3[%c0_20, %c0_21, %c0_22] : memref<1x8x128xf32, #tpu.memory_space<vmem>>, vector<1x8x128xf32>
    tpu.vector_store %arg3[%c0_20, %c0_21, %c0_22], %67 {strides = array<i32>} : memref<1x8x128xf32, #tpu.memory_space<vmem>>, vector<1x8x128xf32>,
    return
  }
  func.func @transform_0(%arg0: i32) -> (i32, i32) {
    %c0_i32 = arith.constant 0 : i32
    %c0_i32_0 = arith.constant 0 : i32
    return %arg0, %c0_i32 : i32, i32
  }
  func.func @transform_1(%arg0: i32) -> (i32, i32) {
    %c0_i32 = arith.constant 0 : i32
    %c0_i32_0 = arith.constant 0 : i32
    return %arg0, %c0_i32 : i32, i32
  }
  func.func @transform_2(%arg0: i32) -> (i32, i32, i32) {
    %c0_i32 = arith.constant 0 : i32
    %c0_i32_0 = arith.constant 0 : i32
    %c0_i32_1 = arith.constant 0 : i32
    return %arg0, %c0_i32, %c0_i32_0 : i32, i32, i32
  }
}

</mosaic_0001>

<llo_original>
// kernel: tpu_custom_call.1
$region0: #{tpu_custom_call.1}
  #allocation0 [shape = 'u32[]', space=smem, size = 0x4, offset = 0x4, fixed_abs, tag = 'smem constant byte address 0x4 - core index']
  #allocation1 [shape = 'u32[144,128]{1,0:T(1,128)}', space=vmem, size = 0x12000, scoped, tag = 'internal scratch']
  %s0 = inlined_call_operand.hbm [shape: f32[8,256], index: 0, kind: input, shape index: {}]
  %s1 = inlined_call_operand.hbm [shape: f32[8,256], index: 1, kind: input, shape index: {}]
  %s2 = inlined_call_operand.hbm [shape: f32[1,8,128], index: 2, kind: output, shape index: {}]
  %s3 = sld [smem:[#allocation0]]
  $region26: #{tpu_custom_call.1} parent=0
    _
  %s5 = ssub.s32 1, %s3
  %s6 = scalar_select 0, %s5, %s3
  $region1: #{tpu_custom_call.1} parent=0
    #allocation2 [shape = 'u8[8192]{0}', space=vmem, size = 0x2000, scoped, tag = 'input window, operand 0, single buffered']
    #allocation3 [shape = 's32[1]{0}', space=sflag, size = 0x4, scoped, tag = 'scoped memory for tpu_custom_call.1']
    #allocation4 [shape = 's32[1]{0}', space=sflag, size = 0x4, scoped, tag = 'scoped memory for tpu_custom_call.1']
    #allocation5 [shape = 'u8[8192]{0}', space=vmem, size = 0x2000, scoped, tag = 'input window, operand 1, single buffered']
    #allocation6 [shape = 's32[1]{0}', space=sflag, size = 0x4, scoped, tag = 'scoped memory for tpu_custom_call.1']
    #allocation7 [shape = 'u8[4096]{0}', space=vmem, size = 0x1000, scoped, tag = 'output window, operand 0, single buffered']
    %7 = vsyncpa [#allocation3], 0
    %8 = vsyncpa [#allocation6], 0
    %9 = vsyncpa [#allocation4], 0
    // Predicated region
    $region2: #{tpu_custom_call.1} parent=1 // pred_check
      _
    $region3: #{tpu_custom_call.1} parent=1 // pred_check_branch
      %11 = sbr.rel (0) target = $region5
    $region4: #{tpu_custom_call.1} parent=1 // pred_region
      %s13 = ssub.s32 256, 256
      %14 = vsyncadd [#allocation3], %s13
      %s16 = sshll.u32 [#allocation2], 4
      %s17 = int_to_ptr.vmem [resolvable:$true] %s16
      %19 = dma.hbm_to_vmem [thread:$0]  %s0, 256, %s17, [#allocation3]
    $region5: #{tpu_custom_call.1} parent=1 // pred_fallthru
      _
    // Predicated region
    $region6: #{tpu_custom_call.1} parent=1 // pred_check
      _
    $region7: #{tpu_custom_call.1} parent=1 // pred_check_branch
      %21 = sbr.rel (0) target = $region9
    $region8: #{tpu_custom_call.1} parent=1 // pred_region
      %s23 = ssub.s32 256, 256
      %24 = vsyncadd [#allocation6], %s23
      %s26 = sshll.u32 [#allocation5], 4
      %s27 = int_to_ptr.vmem [resolvable:$true] %s26
      %29 = dma.hbm_to_vmem [thread:$0]  %s1, 256, %s27, [#allocation6]
    $region9: #{tpu_custom_call.1} parent=1 // pred_fallthru
      _
    // Predicated region
    $region10: #{tpu_custom_call.1} parent=1 // pred_check
      _
    $region11: #{tpu_custom_call.1} parent=1 // pred_check_branch
      %31 = sbr.rel (0) target = $region13
    $region12: #{tpu_custom_call.1} parent=1 // pred_region
      %32 = dma.done [#allocation3], 256
    $region13: #{tpu_custom_call.1} parent=1 // pred_fallthru
      _
    // Predicated region
    $region14: #{tpu_custom_call.1} parent=1 // pred_check
      _
    $region15: #{tpu_custom_call.1} parent=1 // pred_check_branch
      %34 = sbr.rel (0) target = $region17
    $region16: #{tpu_custom_call.1} parent=1 // pred_region
      %35 = dma.done [#allocation6], 256
    $region17: #{tpu_custom_call.1} parent=1 // pred_fallthru
      _
    %v36 = vld [vmem:[#allocation2] sm:$0xff]
    %v37 = vld [vmem:[#allocation2 + $0x8] sm:$0xff]
    %v38 = vld [vmem:[#allocation5] sm:$0xff]
    %v39 = vld [vmem:[#allocation5 + $0x8] sm:$0xff]
    %v40 = vadd.f32 %v36, %v37
    %41 = vadd.xlane.f32.xlu0 %v40
    %v42 = vpop.xlane.xlu0 %41
    %v43 = vmul.f32 %v42, 0.00390625
    %v44 = vadd.f32 %v38, %v39
    %45 = vadd.xlane.f32.xlu0 %v44
    %v46 = vpop.xlane.xlu0 %45
    %v47 = vmul.f32 %v46, 0.00390625
    %v48 = vsub.f32 %v36, %v43
    %v49 = vsub.f32 %v37, %v43
    %v50 = vsub.f32 %v38, %v47
    %v51 = vsub.f32 %v39, %v47
    %v52 = vmul.f32 %v48, %v48
    %v53 = vmul.f32 %v49, %v49
    %v54 = vadd.f32 %v52, %v53
    %55 = vadd.xlane.f32.xlu0 %v54
    %v56 = vpop.xlane.xlu0 %55
    %v57 = vmul.f32 %v56, 0.003921569
    %v58 = vmul.f32 %v50, %v50
    %v59 = vmul.f32 %v51, %v51
    %v60 = vadd.f32 %v58, %v59
    %61 = vadd.xlane.f32.xlu0 %v60
    %v62 = vpop.xlane.xlu0 %61
    %v63 = vmul.f32 %v62, 0.003921569
    %v64 = vadd.f32 %v57, 1e-05
    %v65 = vrsqrt.pop %v64
    %v66 = vmul.f32 %v64, %v65
    %vm67 = vcmp.eq.f32.partialorder %v64, inf
    %v68 = vsel %vm67, %v64, %v66
    %vm69 = vcmp.eq.f32.partialorder %v64, 0.0
    %v70 = vand.u32 %v64, 2147483648
    %v71 = vsel %vm69, %v70, %v68
    %v72 = vadd.f32 %v63, 1e-05
    %v73 = vrsqrt.pop %v72
    %v74 = vmul.f32 %v72, %v73
    %vm75 = vcmp.eq.f32.partialorder %v72, inf
    %v76 = vsel %vm75, %v72, %v74
    %vm77 = vcmp.eq.f32.partialorder %v72, 0.0
    %v78 = vand.u32 %v72, 2147483648
    %v79 = vsel %vm77, %v78, %v76
    %s80 = smul.u32 0, 8
    %v81 = vlaneseq
    %v82 = vshrl.u32 %v81, 7
    %v83 = vstv %s80
    %v84 = vadd.s32 %v83, %v82
    %vm85 = vcmp.lt.s32.totalorder %v84, 8
    %v86 = vsub.f32 %v43, %v47
    %v87 = vsel %vm85, %v86, 0.0
    %v88 = vsub.f32 %v71, %v79
    %v89 = vsel %vm85, %v88, 0.0
    %v90 = vmul.f32 %v87, %v87
    %vm91 = vcmask 7168
    %v92 = vsel %vm91, %v90, 0.0
    %93 = vadd.xlane.f32.xlu0 %v92
    %v94 = vpop.xlane.xlu0 %93
    %v95 = vrot.slane %v94, 4
    %v96 = vadd.f32 %v94, %v95
    %v97 = vrot.slane %v96, 2
    %v98 = vadd.f32 %v96, %v97
    %v99 = vrot.slane %v98, 1
    %v100 = vadd.f32 %v98, %v99
    %s101 = vtos %v100
    %v102 = vmul.f32 %v89, %v89
    %v103 = vsel %vm91, %v102, 0.0
    %104 = vadd.xlane.f32.xlu0 %v103
    %v105 = vpop.xlane.xlu0 %104
    %v106 = vrot.slane %v105, 4
    %v107 = vadd.f32 %v105, %v106
    %v108 = vrot.slane %v107, 2
    %v109 = vadd.f32 %v107, %v108
    %v110 = vrot.slane %v109, 1
    %v111 = vadd.f32 %v109, %v110
    %s112 = vtos %v111
    %v113 = vlaneseq
    %v114 = vand.u32 %v113, 127
    %vm115 = vcmp.eq.s32.totalorder %v114, 0
    %vm116 = vcmp.eq.s32.totalorder %v114, 1
    %v117 = vstv %s112
    %v118 = vsel %vm116, %v117, 0.0
    %v119 = vstv %s101
    %v120 = vsel %vm115, %v119, %v118
    %vm121 = vcmp.eq.s32.totalorder %v82, 0
    %v122 = vsel %vm121, %v120, 0.0
    %123 = vst [vmem:[#allocation7] sm:$0xff] %v122
    // Predicated region
    $region18: #{tpu_custom_call.1} parent=1 // pred_check
      _
    $region19: #{tpu_custom_call.1} parent=1 // pred_check_branch
      %125 = sbr.rel (0) target = $region21
    $region20: #{tpu_custom_call.1} parent=1 // pred_region
      %s127 = ssub.s32 128, 128
      %128 = vsyncadd [#allocation4], %s127
      %s130 = sshll.u32 [#allocation7], 4
      %s131 = int_to_ptr.vmem [resolvable:$true] %s130
      %133 = dma.vmem_to_hbm [thread:$0]  %s131, 128, %s2, [#allocation4]
    $region21: #{tpu_custom_call.1} parent=1 // pred_fallthru
      _
    // Predicated region
    $region22: #{tpu_custom_call.1} parent=1 // pred_check
      _
    $region23: #{tpu_custom_call.1} parent=1 // pred_check_branch
      %135 = sbr.rel (0) target = $region25
    $region24: #{tpu_custom_call.1} parent=1 // pred_region
      %136 = dma.done [#allocation4], 128
    $region25: #{tpu_custom_call.1} parent=1 // pred_fallthru
      _
    %137 = vsyncpa [#allocation3], 1
    %138 = vsyncpa [#allocation6], 1
    %139 = vsyncpa [#allocation4], 1

</llo_original>
